<compile_context>
chip_gen: v7x
topology: tpu7x:2x2x1
jax: 0.10.0
libtpu: 0.0.40
codegen_flags: <defaults>
</compile_context>

<pallas_src>
import functools

import jax
import jax.numpy as jnp
from jax import lax
from jax.experimental import pallas as pl
from jax.experimental.pallas import tpu as pltpu

_MIB = 1024 * 1024


# ------------------------------------------------------------------ #
# VMEM planning helpers (generation-aware: v7x = 64 MiB, v5e/v6e = 128 MiB)
# ------------------------------------------------------------------ #
def _round_up(x, m):
    return (x + m - 1) // m * m


def _vmem_capacity_bytes():
    """Physical VMEM of the local TPU generation."""
    try:
        return int(pltpu.get_tpu_info().vmem_capacity_bytes)
    except Exception:
        return 64 * _MIB            # conservative default (v7x-sized)


def _vmem_limit(est_bytes, capacity):
    """Scoped-VMEM limit with headroom for `est_bytes`, capped below physical VMEM."""
    return int(min(capacity - 8 * _MIB,
                   max(32 * _MIB, int(est_bytes * 1.4) + 8 * _MIB)))


def _choose_row_tile(M, per_row_bytes, resident_bytes, budget_bytes):
    """Largest legal row tile (multiple of 8 or full M) fitting the VMEM budget."""
    cands = ([M] if M <= 512 else []) + [t for t in (512, 256, 128, 64, 32) if t < M]
    for tm in cands:
        if resident_bytes + 2 * tm * per_row_bytes <= budget_bytes:
            return tm
    return cands[-1]


def _proj_plan(M, Din, dout_list, x_item, out_item, capacity):
    """Row tile + vmem limit for the projection kernels."""
    w_item = 4                                                     # f32 weights/biases
    resident = sum(Din * d + d for d in dout_list) * w_item       # single-buffered consts
    per_row = Din * x_item + sum(dout_list) * (out_item + 4)      # in + outs + f32 partials
    tm = _choose_row_tile(M, per_row, resident, int(capacity * 0.5))
    est = resident + 2 * tm * per_row
    return tm, _vmem_limit(est, capacity)


# ------------------------------------------------------------------ #
# Fused Q/K/V projection kernel
# ------------------------------------------------------------------ #
def _qkv_kernel(x_ref, w_ref, b_ref, q_ref, k_ref, v_ref, *, matmul_dtype):
    # x_ref: (tm, Din);  w_ref: (3, D, Din) torch (out, in) layout;  b_ref: (3, 1, D)
    x = x_ref[...]
    if matmul_dtype is not None:
        x = x.astype(matmul_dtype)
    for i, o_ref in enumerate((q_ref, k_ref, v_ref)):
        w = w_ref[i]                                              # (D, Din)
        if matmul_dtype is not None:
            w = w.astype(matmul_dtype)
        # Contract on the last dim of both operands -> no weight transpose.
        y = lax.dot_general(x, w, (((1,), (1,)), ((), ())),
                            preferred_element_type=jnp.float32)
        o_ref[...] = (y + b_ref[i]).astype(o_ref.dtype)


def fused_qkv_projection(x, qkv_w, qkv_b, matmul_dtype=None):
    """x: (B, N, Din); qkv_w: (3, D, Din); qkv_b: (3, 1, D) -> q, k, v (B, N, D)."""
    B, N, Din = x.shape
    D = qkv_w.shape[1]
    M = B * N
    out_dtype = matmul_dtype if matmul_dtype is not None else x.dtype
    capacity = _vmem_capacity_bytes()
    tm, vmem_limit = _proj_plan(M, Din, [D, D, D], jnp.dtype(x.dtype).itemsize,
                                jnp.dtype(out_dtype).itemsize, capacity)
    xf = x.reshape(M, Din)
    const = pl.Buffered(1)       # constant block index -> single DMA, single buffer
    q, k, v = pl.pallas_call(
        functools.partial(_qkv_kernel, matmul_dtype=matmul_dtype),
        out_shape=tuple(jax.ShapeDtypeStruct((M, D), out_dtype) for _ in range(3)),
        grid=(pl.cdiv(M, tm),),
        in_specs=[
            pl.BlockSpec((tm, Din), lambda i: (i, 0)),
            pl.BlockSpec((3, D, Din), lambda i: (0, 0, 0), pipeline_mode=const),
            pl.BlockSpec((3, 1, D), lambda i: (0, 0, 0), pipeline_mode=const),
        ],
        out_specs=tuple(pl.BlockSpec((tm, D), lambda i: (i, 0)) for _ in range(3)),
        compiler_params=pltpu.CompilerParams(
            dimension_semantics=("parallel",), vmem_limit_bytes=vmem_limit),
    )(xf, qkv_w, qkv_b)
    return q.reshape(B, N, D), k.reshape(B, N, D), v.reshape(B, N, D)


# ------------------------------------------------------------------ #
# Generic linear kernel (out projection), row-tiled over B*N
# ------------------------------------------------------------------ #
def _linear_kernel(x_ref, w_ref, b_ref, o_ref, *, matmul_dtype):
    x = x_ref[...]
    w = w_ref[...]
    if matmul_dtype is not None:
        x = x.astype(matmul_dtype)
        w = w.astype(matmul_dtype)
    y = lax.dot_general(x, w, (((1,), (1,)), ((), ())),
                        preferred_element_type=jnp.float32)
    o_ref[...] = (y + b_ref[...]).astype(o_ref.dtype)


def linear_projection(x, w, b, matmul_dtype=None, out_dtype=None):
    """x: (B, N, Din); w: (Dout, Din) torch layout; b: (Dout,) or (1, Dout)."""
    B, N, Din = x.shape
    Dout = w.shape[0]
    M = B * N
    out_dtype = out_dtype if out_dtype is not None else x.dtype
    capacity = _vmem_capacity_bytes()
    tm, vmem_limit = _proj_plan(M, Din, [Dout], jnp.dtype(x.dtype).itemsize,
                                jnp.dtype(out_dtype).itemsize, capacity)
    xf = x.reshape(M, Din)
    b2 = jnp.reshape(b, (1, Dout))
    const = pl.Buffered(1)
    y = pl.pallas_call(
        functools.partial(_linear_kernel, matmul_dtype=matmul_dtype),
        out_shape=jax.ShapeDtypeStruct((M, Dout), out_dtype),
        grid=(pl.cdiv(M, tm),),
        in_specs=[
            pl.BlockSpec((tm, Din), lambda i: (i, 0)),
            pl.BlockSpec((Dout, Din), lambda i: (0, 0), pipeline_mode=const),
            pl.BlockSpec((1, Dout), lambda i: (0, 0), pipeline_mode=const),
        ],
        out_specs=pl.BlockSpec((tm, Dout), lambda i: (i, 0)),
        compiler_params=pltpu.CompilerParams(
            dimension_semantics=("parallel",), vmem_limit_bytes=vmem_limit),
    )(xf, w, b2)
    return y.reshape(B, N, Dout)


# ------------------------------------------------------------------ #
# Attention tile selection (generation-aware)
# ------------------------------------------------------------------ #
def _attn_footprint_bytes(hc, tq, seq, head_dim, qkv_item, w_item, emit_weights):
    """VMEM footprint of one attention grid step, incl. double-buffering,
    lane padding of N, and the f32 score/exp intermediates."""
    blk = _round_up(hc * head_dim, 128)
    lanes = _round_up(seq, 128)
    tq8 = _round_up(tq, 8)
    seq8 = _round_up(seq, 8)
    q_b = tq8 * blk * qkv_item
    kv_b = 2 * seq8 * blk * qkv_item
    o_b = tq8 * blk * qkv_item
    w_b = hc * tq8 * lanes * w_item if emit_weights else 0
    interm = 3 * tq8 * lanes * 4 + tq8 * _round_up(head_dim, 128) * 4
    return 2 * (q_b + kv_b + o_b + w_b) + interm


def _choose_attention_tiles(num_heads, head_dim, seq, qkv_item, w_item,
                            emit_weights, budget_bytes):
    """Pick (heads-per-block, query-row tile) under the VMEM budget.

    Head chunks must yield lane-dense blocks: Hc == num_heads (full width) or
    Hc*head_dim a multiple of 128.  If the largest chunk does not fit, shrink
    the query-row tile (flash-style) before shrinking the head chunk."""
    divisors = [d for d in range(num_heads, 0, -1) if num_heads % d == 0]
    chunks = [d for d in divisors if d == num_heads or (d * head_dim) % 128 == 0]
    tq_cands = [seq] if seq <= 256 else [t for t in (256, 128, 64, 32, 16, 8) if t < seq]
    for tq in tq_cands:
        for hc in chunks:
            if _attn_footprint_bytes(hc, tq, seq, head_dim, qkv_item, w_item,
                                     emit_weights) <= budget_bytes:
                return hc, tq
    # TODO(synk): pathological sequence lengths would additionally need K/V (flash) tiling.
    return chunks[-1], tq_cands[-1]


# ------------------------------------------------------------------ #
# Attention kernel: grid = (batch, head-chunk, query-row tile)
# ------------------------------------------------------------------ #
def _attn_body(q_ref, k_ref, v_ref, o_ref, w_ref, *, heads_per_block, head_dim,
               matmul_dtype):
    # q_ref/o_ref: (1, tq, Hc*hd); k_ref/v_ref: (1, N, Hc*hd); w_ref: (1, Hc, tq, N)|None
    approx = matmul_dtype is not None
    for h in range(heads_per_block):
        cols = slice(h * head_dim, (h + 1) * head_dim)           # static ref slice
        q = q_ref[0, :, cols]                     # (tq, hd); scale folded into q proj
        k = k_ref[0, :, cols]                     # (N,  hd)
        v = v_ref[0, :, cols]                     # (N,  hd)
        if matmul_dtype is not None:
            q = q.astype(matmul_dtype)
            k = k.astype(matmul_dtype)
            v = v.astype(matmul_dtype)
        # q @ k^T on the MXU, f32 accumulation.
        s = lax.dot_general(q, k, (((1,), (1,)), ((), ())),
                            preferred_element_type=jnp.float32)  # (tq, N)
        # softmax in float32 (matches torch softmax(dtype=float32))
        s = s - jnp.max(s, axis=-1, keepdims=True)
        e = jnp.exp(s)
        p = e * pl.reciprocal(jnp.sum(e, axis=-1, keepdims=True), approx=approx)
        if w_ref is not None:
            w_ref[0, h] = p.astype(w_ref.dtype)
        # dropout p = 0.0 -> identity (SiglipVisionConfig.attention_dropout == 0.0)
        pv = p.astype(matmul_dtype) if matmul_dtype is not None else p
        o = jnp.dot(pv, v, preferred_element_type=jnp.float32)   # (tq, hd)
        o_ref[0, :, cols] = o.astype(o_ref.dtype)  # direct per-head store, no concat


def _attn_kernel_weights(q_ref, k_ref, v_ref, o_ref, w_ref, **kw):
    _attn_body(q_ref, k_ref, v_ref, o_ref, w_ref, **kw)


def _attn_kernel_no_weights(q_ref, k_ref, v_ref, o_ref, **kw):
    _attn_body(q_ref, k_ref, v_ref, o_ref, None, **kw)


def attention_core(q, k, v, num_heads, *, matmul_dtype=None, return_weights=True,
                   weights_dtype=None):
    """q, k, v: (B, N, D) with heads packed along the last dim.

    Returns attn_out (B, N, D) and attn_weights (B, H, N, N) (or None)."""
    B, N, D = q.shape
    head_dim = D // num_heads
    weights_dtype = weights_dtype if weights_dtype is not None else q.dtype
    qkv_item = jnp.dtype(q.dtype).itemsize
    w_item = jnp.dtype(weights_dtype).itemsize
    capacity = _vmem_capacity_bytes()
    hc, tq = _choose_attention_tiles(num_heads, head_dim, N, qkv_item, w_item,
                                     return_weights, int(capacity * 0.3))
    n_chunks = num_heads // hc
    n_q = pl.cdiv(N, tq)
    blk = hc * head_dim

    kern_kwargs = dict(heads_per_block=hc, head_dim=head_dim, matmul_dtype=matmul_dtype)
    q_spec = pl.BlockSpec((1, tq, blk), lambda b, c, qi: (b, qi, c))
    kv_spec = pl.BlockSpec((1, N, blk), lambda b, c, qi: (b, 0, c))   # resident over qi
    o_spec = pl.BlockSpec((1, tq, blk), lambda b, c, qi: (b, qi, c))
    o_shape = jax.ShapeDtypeStruct((B, N, D), q.dtype)

    if return_weights:
        kern = functools.partial(_attn_kernel_weights, **kern_kwargs)
        out_shape = (o_shape, jax.ShapeDtypeStruct((B, num_heads, N, N), weights_dtype))
        out_specs = (o_spec,
                     pl.BlockSpec((1, hc, tq, N), lambda b, c, qi: (b, c, qi, 0)))
    else:
        kern = functools.partial(_attn_kernel_no_weights, **kern_kwargs)
        out_shape = o_shape
        out_specs = o_spec

    est = _attn_footprint_bytes(hc, tq, N, head_dim, qkv_item, w_item, return_weights)
    result = pl.pallas_call(
        kern,
        out_shape=out_shape,
        grid=(B, n_chunks, n_q),
        in_specs=[q_spec, kv_spec, kv_spec],
        out_specs=out_specs,
        compiler_params=pltpu.CompilerParams(
            dimension_semantics=("parallel", "parallel", "parallel"),
            vmem_limit_bytes=_vmem_limit(est, capacity)),
    )(q, k, v)

    if return_weights:
        return result[0], result[1]
    return result, None


# ------------------------------------------------------------------ #
# Parameter packing (done once, outside the per-call path)
# ------------------------------------------------------------------ #
def pack_siglip_attention_params(params, num_heads):
    """Stack q/k/v weights, fold the 1/sqrt(head_dim) scale into the q proj."""
    D = params["q_w"].shape[0]
    head_dim = D // num_heads
    scale = head_dim ** (-0.5)
    qkv_w = jnp.stack([params["q_w"] * scale, params["k_w"], params["v_w"]], axis=0)
    qkv_b = jnp.stack([params["q_b"] * scale, params["k_b"], params["v_b"]], axis=0)
    return {
        "qkv_w": qkv_w,                          # (3, D, D), torch (out, in) layout
        "qkv_b": qkv_b.reshape(3, 1, D),
        "o_w": params["o_w"],                    # (D, D)
        "o_b": params["o_b"].reshape(1, D),
    }


# ------------------------------------------------------------------ #
# Full SiglipAttention forward
# ------------------------------------------------------------------ #
def siglip_attention(hidden_states, packed_params, num_heads, *,
                     matmul_dtype=jnp.bfloat16, return_weights=True,
                     weights_dtype=None):
    """SiglipAttention.forward.

    matmul_dtype=jnp.bfloat16 (default): bf16 MXU matmuls with f32 accumulation
    and f32 softmax; q/k/v round-trip HBM in bf16.
    matmul_dtype=None: exact f32 torch semantics throughout."""
    weights_dtype = weights_dtype if weights_dtype is not None else hidden_states.dtype
    q, k, v = fused_qkv_projection(hidden_states, packed_params["qkv_w"],
                                   packed_params["qkv_b"], matmul_dtype)
    attn_out, attn_weights = attention_core(q, k, v, num_heads,
                                            matmul_dtype=matmul_dtype,
                                            return_weights=return_weights,
                                            weights_dtype=weights_dtype)
    out = linear_projection(attn_out, packed_params["o_w"], packed_params["o_b"],
                            matmul_dtype, out_dtype=hidden_states.dtype)
    return out, attn_weights


# ------------------------------------------------------------------ #
# Pure-JAX reference for verification
# ------------------------------------------------------------------ #
def siglip_attention_ref(x, params, num_heads):
    B, N, D = x.shape
    hd = D // num_heads
    scale = hd ** (-0.5)

    def lin(t, w, b):
        return t @ w.T + b

    def split(t):
        return t.reshape(B, N, num_heads, hd).transpose(0, 2, 1, 3)

    q = split(lin(x, params["q_w"], params["q_b"]))
    k = split(lin(x, params["k_w"], params["k_b"]))
    v = split(lin(x, params["v_w"], params["v_b"]))
    s = jnp.einsum("bhqd,bhkd->bhqk", q, k) * scale
    p = jax.nn.softmax(s.astype(jnp.float32), axis=-1).astype(q.dtype)
    o = jnp.einsum("bhqk,bhkd->bhqd", p, v)
    o = o.transpose(0, 2, 1, 3).reshape(B, N, D)
    o = lin(o, params["o_w"], params["o_b"])
    return o, p


if __name__ == "__main__":
    # Small config consistent with SiglipVisionConfig semantics.
    batch = 2
    num_patches = 8
    hidden_size = 32
    num_heads = 4

    key = jax.random.PRNGKey(0)
    ks = jax.random.split(key, 9)
    scale_init = 0.02
    params = {
        "q_w": scale_init * jax.random.normal(ks[0], (hidden_size, hidden_size), jnp.float32),
        "q_b": scale_init * jax.random.normal(ks[1], (hidden_size,), jnp.float32),
        "k_w": scale_init * jax.random.normal(ks[2], (hidden_size, hidden_size), jnp.float32),
        "k_b": scale_init * jax.random.normal(ks[3], (hidden_size,), jnp.float32),
        "v_w": scale_init * jax.random.normal(ks[4], (hidden_size, hidden_size), jnp.float32),
        "v_b": scale_init * jax.random.normal(ks[5], (hidden_size,), jnp.float32),
        "o_w": scale_init * jax.random.normal(ks[6], (hidden_size, hidden_size), jnp.float32),
        "o_b": scale_init * jax.random.normal(ks[7], (hidden_size,), jnp.float32),
    }
    x = jax.random.normal(ks[8], (batch, num_patches, hidden_size), jnp.float32)

    packed = pack_siglip_attention_params(params, num_heads)
    out_ref, weights_ref = siglip_attention_ref(x, params, num_heads)

    # 1) Exact f32 path: matches torch semantics tightly.
    out_f32, w_f32 = siglip_attention(x, packed, num_heads, matmul_dtype=None)
    jax.block_until_ready((out_f32, w_f32))
    assert out_f32.shape == (batch, num_patches, hidden_size)
    assert w_f32.shape == (batch, num_heads, num_patches, num_patches)
    assert jnp.allclose(out_f32, out_ref, atol=1e-5, rtol=1e-5)
    assert jnp.allclose(w_f32, weights_ref, atol=1e-5, rtol=1e-5)

    # 2) Default fast path: bf16 MXU matmuls, f32 softmax/accumulation.
    out_bf, w_bf = siglip_attention(x, packed, num_heads)
    jax.block_until_ready((out_bf, w_bf))
    assert out_bf.shape == (batch, num_patches, hidden_size)
    assert w_bf.shape == (batch, num_heads, num_patches, num_patches)
    assert jnp.allclose(out_bf, out_ref, atol=2e-2, rtol=2e-2)
    assert jnp.allclose(w_bf, weights_ref, atol=2e-2, rtol=2e-2)

    # 3) Weights-free fast path (skips the big (B,H,N,N) HBM write).
    out_nw, w_none = siglip_attention(x, packed, num_heads, return_weights=False)
    jax.block_until_ready(out_nw)
    assert w_none is None
    assert jnp.allclose(out_nw, out_ref, atol=2e-2, rtol=2e-2)

    print("KERNEL_OK")
</pallas_src>

<mosaic_0001>
module attributes {stable_mosaic.version = 11 : i64} {
  func.func @_qkv_kernel(%arg0: i32, %arg1: memref<16x32xf32, #tpu.memory_space<vmem>>, %arg2: memref<3x32x32xf32, #tpu.memory_space<vmem>>, %arg3: memref<3x1x32xf32, #tpu.memory_space<vmem>>, %arg4: memref<16x32xf32, #tpu.memory_space<vmem>>, %arg5: memref<16x32xf32, #tpu.memory_space<vmem>>, %arg6: memref<16x32xf32, #tpu.memory_space<vmem>>) attributes {dimension_semantics = [#tpu.dimension_semantics<parallel>], iteration_bounds = array<i64: 1>, scalar_prefetch = 0 : i64, scratch_operands = 0 : i64, tpu.core_type = #tpu.core_type<tc>, window_params = [{transform_indices = @transform_0, window_bounds = array<i64: 16, 32>}, {pipeline_mode = #tpu.pipeline_mode<synchronous>, transform_indices = @transform_1, window_bounds = array<i64: 3, 32, 32>}, {pipeline_mode = #tpu.pipeline_mode<synchronous>, transform_indices = @transform_2, window_bounds = array<i64: 3, 1, 32>}, {transform_indices = @transform_3, window_bounds = array<i64: 16, 32>}, {transform_indices = @transform_4, window_bounds = array<i64: 16, 32>}, {transform_indices = @transform_5, window_bounds = array<i64: 16, 32>}]} {
    %c0 = arith.constant 0 : index
    %c0_0 = arith.constant 0 : index
    %0 = vector.load %arg1[%c0, %c0_0] : memref<16x32xf32, #tpu.memory_space<vmem>>, vector<16x32xf32>
    %c0_1 = arith.constant 0 : index
    %c0_2 = arith.constant 0 : index
    %c0_3 = arith.constant 0 : index
    %1 = vector.load %arg2[%c0_1, %c0_2, %c0_3] : memref<3x32x32xf32, #tpu.memory_space<vmem>>, vector<1x32x32xf32>
    %2 = vector.shape_cast %1 : vector<1x32x32xf32> to vector<32x32xf32>
    %cst = arith.constant dense<0.000000e+00> : vector<16x32xf32>
    %3 = tpu.matmul %0, %2, %cst {dimension_numbers = #tpu.dot_dimension_numbers<[1], [1], [0], [0], [0, 0, 1, 0], [], []>} : vector<16x32xf32>, vector<32x32xf32>, vector<16x32xf32> -> vector<16x32xf32>
    %c0_4 = arith.constant 0 : index
    %c0_5 = arith.constant 0 : index
    %c0_6 = arith.constant 0 : index
    %4 = vector.load %arg3[%c0_4, %c0_5, %c0_6] : memref<3x1x32xf32, #tpu.memory_space<vmem>>, vector<1x1x32xf32>
    %5 = vector.shape_cast %4 : vector<1x1x32xf32> to vector<1x32xf32>
    %6 = vector.broadcast %5 : vector<1x32xf32> to vector<16x32xf32>
    %7 = arith.addf %3, %6 : vector<16x32xf32>
    %c0_7 = arith.constant 0 : index
    %c0_8 = arith.constant 0 : index
    %8 = vector.load %arg4[%c0_7, %c0_8] : memref<16x32xf32, #tpu.memory_space<vmem>>, vector<16x32xf32>
    tpu.vector_store %arg4[%c0_7, %c0_8], %7 {strides = array<i32>} : memref<16x32xf32, #tpu.memory_space<vmem>>, vector<16x32xf32>,
    %c1 = arith.constant 1 : index
    %c0_9 = arith.constant 0 : index
    %c0_10 = arith.constant 0 : index
    %9 = vector.load %arg2[%c1, %c0_9, %c0_10] : memref<3x32x32xf32, #tpu.memory_space<vmem>>, vector<1x32x32xf32>
    %10 = vector.shape_cast %9 : vector<1x32x32xf32> to vector<32x32xf32>
    %cst_11 = arith.constant dense<0.000000e+00> : vector<16x32xf32>
    %11 = tpu.matmul %0, %10, %cst_11 {dimension_numbers = #tpu.dot_dimension_numbers<[1], [1], [0], [0], [0, 0, 1, 0], [], []>} : vector<16x32xf32>, vector<32x32xf32>, vector<16x32xf32> -> vector<16x32xf32>
    %c1_12 = arith.constant 1 : index
    %c0_13 = arith.constant 0 : index
    %c0_14 = arith.constant 0 : index
    %12 = vector.load %arg3[%c1_12, %c0_13, %c0_14] : memref<3x1x32xf32, #tpu.memory_space<vmem>>, vector<1x1x32xf32>
    %13 = vector.shape_cast %12 : vector<1x1x32xf32> to vector<1x32xf32>
    %14 = vector.broadcast %13 : vector<1x32xf32> to vector<16x32xf32>
    %15 = arith.addf %11, %14 : vector<16x32xf32>
    %c0_15 = arith.constant 0 : index
    %c0_16 = arith.constant 0 : index
    %16 = vector.load %arg5[%c0_15, %c0_16] : memref<16x32xf32, #tpu.memory_space<vmem>>, vector<16x32xf32>
    tpu.vector_store %arg5[%c0_15, %c0_16], %15 {strides = array<i32>} : memref<16x32xf32, #tpu.memory_space<vmem>>, vector<16x32xf32>,
    %c2 = arith.constant 2 : index
    %c0_17 = arith.constant 0 : index
    %c0_18 = arith.constant 0 : index
    %17 = vector.load %arg2[%c2, %c0_17, %c0_18] : memref<3x32x32xf32, #tpu.memory_space<vmem>>, vector<1x32x32xf32>
    %18 = vector.shape_cast %17 : vector<1x32x32xf32> to vector<32x32xf32>
    %cst_19 = arith.constant dense<0.000000e+00> : vector<16x32xf32>
    %19 = tpu.matmul %0, %18, %cst_19 {dimension_numbers = #tpu.dot_dimension_numbers<[1], [1], [0], [0], [0, 0, 1, 0], [], []>} : vector<16x32xf32>, vector<32x32xf32>, vector<16x32xf32> -> vector<16x32xf32>
    %c2_20 = arith.constant 2 : index
    %c0_21 = arith.constant 0 : index
    %c0_22 = arith.constant 0 : index
    %20 = vector.load %arg3[%c2_20, %c0_21, %c0_22] : memref<3x1x32xf32, #tpu.memory_space<vmem>>, vector<1x1x32xf32>
    %21 = vector.shape_cast %20 : vector<1x1x32xf32> to vector<1x32xf32>
    %22 = vector.broadcast %21 : vector<1x32xf32> to vector<16x32xf32>
    %23 = arith.addf %19, %22 : vector<16x32xf32>
    %c0_23 = arith.constant 0 : index
    %c0_24 = arith.constant 0 : index
    %24 = vector.load %arg6[%c0_23, %c0_24] : memref<16x32xf32, #tpu.memory_space<vmem>>, vector<16x32xf32>
    tpu.vector_store %arg6[%c0_23, %c0_24], %23 {strides = array<i32>} : memref<16x32xf32, #tpu.memory_space<vmem>>, vector<16x32xf32>,
    return
  }
  func.func @transform_0(%arg0: i32) -> (i32, i32) {
    %c0_i32 = arith.constant 0 : i32
    %c0_i32_0 = arith.constant 0 : i32
    return %arg0, %c0_i32 : i32, i32
  }
  func.func @transform_1(%arg0: i32) -> (i32, i32, i32) {
    %c0_i32 = arith.constant 0 : i32
    %c0_i32_0 = arith.constant 0 : i32
    %c0_i32_1 = arith.constant 0 : i32
    %c0_i32_2 = arith.constant 0 : i32
    return %c0_i32, %c0_i32_0, %c0_i32_1 : i32, i32, i32
  }
  func.func @transform_2(%arg0: i32) -> (i32, i32, i32) {
    %c0_i32 = arith.constant 0 : i32
    %c0_i32_0 = arith.constant 0 : i32
    %c0_i32_1 = arith.constant 0 : i32
    %c0_i32_2 = arith.constant 0 : i32
    return %c0_i32, %c0_i32_0, %c0_i32_1 : i32, i32, i32
  }
  func.func @transform_3(%arg0: i32) -> (i32, i32) {
    %c0_i32 = arith.constant 0 : i32
    %c0_i32_0 = arith.constant 0 : i32
    return %arg0, %c0_i32 : i32, i32
  }
  func.func @transform_4(%arg0: i32) -> (i32, i32) {
    %c0_i32 = arith.constant 0 : i32
    %c0_i32_0 = arith.constant 0 : i32
    return %arg0, %c0_i32 : i32, i32
  }
  func.func @transform_5(%arg0: i32) -> (i32, i32) {
    %c0_i32 = arith.constant 0 : i32
    %c0_i32_0 = arith.constant 0 : i32
    return %arg0, %c0_i32 : i32, i32
  }
}

</mosaic_0001>

<llo_original>
// kernel: tpu_custom_call.1
$region0: #{tpu_custom_call.1}
  #allocation0 [shape = 'u32[]', space=smem, size = 0x4, offset = 0x4, fixed_abs, tag = 'smem constant byte address 0x4 - core index']
  #allocation1 [shape = 'u32[144,128]{1,0:T(1,128)}', space=vmem, size = 0x12000, scoped, tag = 'internal scratch']
  %s0 = inlined_call_operand.hbm [shape: f32[16,32], index: 0, kind: input, shape index: {}]
  %s1 = inlined_call_operand.hbm [shape: f32[3,32,32], index: 1, kind: input, shape index: {}]
  %s2 = inlined_call_operand.vmem [shape: f32[3,1,32], index: 2, kind: input, shape index: {}]
  %s3 = inlined_call_operand.hbm [shape: f32[16,32], index: 3, kind: output, shape index: {0}]
  %s4 = inlined_call_operand.hbm [shape: f32[16,32], index: 4, kind: output, shape index: {1}]
  %s5 = inlined_call_operand.hbm [shape: f32[16,32], index: 5, kind: output, shape index: {2}]
  %6 = xla_tuple %s3, %s4, %s5
  %s7 = sld [smem:[#allocation0]]
  $region46: #{tpu_custom_call.1} parent=0
    _
  %s9 = ssub.s32 1, %s7
  %s10 = scalar_select 0, %s9, %s7
  $region1: #{tpu_custom_call.1} parent=0
    #allocation2 [shape = 'u8[8192]{0}', space=vmem, size = 0x2000, scoped, tag = 'input window, operand 0, single buffered']
    #allocation3 [shape = 's32[1]{0}', space=sflag, size = 0x4, scoped, tag = 'scoped memory for tpu_custom_call.1']
    #allocation4 [shape = 's32[1]{0}', space=sflag, size = 0x4, scoped, tag = 'scoped memory for tpu_custom_call.1']
    #allocation5 [shape = 'u8[49152]{0}', space=vmem, size = 0xc000, scoped, tag = 'input window, operand 1, single buffered']
    #allocation6 [shape = 's32[1]{0}', space=sflag, size = 0x4, scoped, tag = 'scoped memory for tpu_custom_call.1']
    #allocation7 [shape = 'u8[8192]{0}', space=vmem, size = 0x2000, scoped, tag = 'output window, operand 0, single buffered']
    #allocation8 [shape = 'u8[8192]{0}', space=vmem, size = 0x2000, scoped, tag = 'output window, operand 1, single buffered']
    #allocation9 [shape = 's32[1]{0}', space=sflag, size = 0x4, scoped, tag = 'scoped memory for tpu_custom_call.1']
    #allocation10 [shape = 'u8[8192]{0}', space=vmem, size = 0x2000, scoped, tag = 'output window, operand 2, single buffered']
    %11 = vsyncpa [#allocation3], 0
    %12 = vsyncpa [#allocation6], 0
    %13 = vsyncpa [#allocation4], 0
    %14 = vsyncpa [#allocation9], 0
    // Predicated region
    $region2: #{tpu_custom_call.1} parent=1 // pred_check
      _
    $region3: #{tpu_custom_call.1} parent=1 // pred_check_branch
      %16 = sbr.rel (0) target = $region5
    $region4: #{tpu_custom_call.1} parent=1 // pred_region
      %s18 = ssub.s32 256, 256
      %19 = vsyncadd [#allocation3], %s18
      %s20 = sshll.u32 [#allocation2], 4
      %s21 = int_to_ptr.vmem [resolvable:$true] %s20
      %26 = dma.hbm_to_vmem [thread:$0]  %s0, 256, %s21, [#allocation3], 128, 128, 8
    $region5: #{tpu_custom_call.1} parent=1 // pred_fallthru
      _
    // Predicated region
    $region6: #{tpu_custom_call.1} parent=1 // pred_check
      _
    $region7: #{tpu_custom_call.1} parent=1 // pred_check_branch
      %28 = sbr.rel (0) target = $region9
    $region8: #{tpu_custom_call.1} parent=1 // pred_region
      %s30 = ssub.s32 1536, 1536
      %31 = vsyncadd [#allocation6], %s30
      %s32 = sshll.u32 [#allocation5], 4
      %s33 = int_to_ptr.vmem [resolvable:$true] %s32
      %38 = dma.hbm_to_vmem [thread:$0]  %s1, 1536, %s33, [#allocation6], 128, 128, 8
    $region9: #{tpu_custom_call.1} parent=1 // pred_fallthru
      _
    // Predicated region
    $region10: #{tpu_custom_call.1} parent=1 // pred_check
      _
    $region11: #{tpu_custom_call.1} parent=1 // pred_check_branch
      %40 = sbr.rel (0) target = $region13
    $region12: #{tpu_custom_call.1} parent=1 // pred_region
      _
    $region13: #{tpu_custom_call.1} parent=1 // pred_fallthru
      _
    // Predicated region
    $region14: #{tpu_custom_call.1} parent=1 // pred_check
      _
    $region15: #{tpu_custom_call.1} parent=1 // pred_check_branch
      %42 = sbr.rel (0) target = $region17
    $region16: #{tpu_custom_call.1} parent=1 // pred_region
      %43 = dma.done [#allocation3], 256
    $region17: #{tpu_custom_call.1} parent=1 // pred_fallthru
      _
    // Predicated region
    $region18: #{tpu_custom_call.1} parent=1 // pred_check
      _
    $region19: #{tpu_custom_call.1} parent=1 // pred_check_branch
      %45 = sbr.rel (0) target = $region21
    $region20: #{tpu_custom_call.1} parent=1 // pred_region
      %46 = dma.done [#allocation6], 1536
    $region21: #{tpu_custom_call.1} parent=1 // pred_fallthru
      _
    %v47 = vld [vmem:[#allocation2] sm:$0xff]
    %v48 = vld [vmem:[#allocation2 + $0x8] sm:$0xff]
    %v49 = vld [vmem:[#allocation5] sm:$0xff]
    %v50 = vld [vmem:[#allocation5 + $0x8] sm:$0xff]
    %v51 = vld [vmem:[#allocation5 + $0x10] sm:$0xff]
    %v52 = vld [vmem:[#allocation5 + $0x18] sm:$0xff]
    %v53 = vld [vmem:[%s2] sm:$0x1]
    %v55 = vlaneseq
    %v56 = vshrl.u32 %v55, 7
    %v57 = vsub.s32 0, %v56
    %v58 = vrot.slane %v53, %v57
    %vm60 = vcmask 261120
    %v62 = vsel %vm60, %v47, 0
    %v65 = vsel %vm60, %v48, 0
    %v68 = vsel %vm60, %v49, 0
    %v71 = vsel %vm60, %v50, 0
    %v74 = vsel %vm60, %v51, 0
    %v77 = vsel %vm60, %v52, 0
    %79 = vmatprep.subr.mxu0 0.0
    %80 = vmatpush1.xpose.msra.mxu0 %v68
    %81 = vmatprep.subr.mxu0 0.0
    %82 = vmatpush1.xpose.msra.mxu0 %v71
    %83 = vmatprep.subr.mxu0 0.0
    %84 = vmatpush1.xpose.msra.mxu0 %v74
    %85 = vmatprep.subr.mxu0 0.0
    %86 = vmatpush1.xpose.msra.mxu0 %v77
    %87 = vmatprep.subr.mxu0 0.0
    %88 = vmatpush1.xpose.msra.mxu0 0.0
    %89 = vmatprep.subr.mxu0 0.0
    %90 = vmatpush1.xpose.msra.mxu0 0.0
    %91 = vmatprep.subr.mxu0 0.0
    %92 = vmatpush1.xpose.msra.mxu0 0.0
    %93 = vmatprep.subr.mxu0 0.0
    %94 = vmatpush1.xpose.msra.mxu0 0.0
    %95 = vmatprep.subr.mxu0 0.0
    %96 = vmatpush1.xpose.msra.mxu0 0.0
    %97 = vmatprep.subr.mxu0 0.0
    %98 = vmatpush1.xpose.msra.mxu0 0.0
    %99 = vmatprep.subr.mxu0 0.0
    %100 = vmatpush1.xpose.msra.mxu0 0.0
    %101 = vmatprep.subr.mxu0 0.0
    %102 = vmatpush1.xpose.msra.mxu0 0.0
    %103 = vmatprep.subr.mxu0 0.0
    %104 = vmatpush1.xpose.msra.mxu0 0.0
    %105 = vmatprep.subr.mxu0 0.0
    %106 = vmatpush1.xpose.msra.mxu0 0.0
    %107 = vmatprep.subr.mxu0 0.0
    %108 = vmatpush1.xpose.msra.mxu0 0.0
    %109 = vmatprep.subr.mxu0 0.0
    %110 = vmatpush1.xpose.msra.mxu0 0.0
    %111 = vmatprep.subr.mxu0 0.0
    %112 = vmatpush1.xpose.msra.mxu0 0.0
    %113 = vmatprep.subr.mxu0 0.0
    %114 = vmatpush1.xpose.msra.mxu0 0.0
    %115 = vmatprep.subr.mxu0 0.0
    %116 = vmatpush1.xpose.msra.mxu0 0.0
    %117 = vmatprep.subr.mxu0 0.0
    %118 = vmatpush1.xpose.msra.mxu0 0.0
    %119 = vmatprep.subr.mxu0 0.0
    %120 = vmatpush1.xpose.msra.mxu0 0.0
    %121 = vmatprep.subr.mxu0 0.0
    %122 = vmatpush1.xpose.msra.mxu0 0.0
    %123 = vmatprep.subr.mxu0 0.0
    %124 = vmatpush1.xpose.msra.mxu0 0.0
    %125 = vmatprep.subr.mxu0 0.0
    %126 = vmatpush1.xpose.msra.mxu0 0.0
    %127 = vmatprep.subr.mxu0 0.0
    %128 = vmatpush1.xpose.msra.mxu0 0.0
    %129 = vmatprep.subr.mxu0 0.0
    %130 = vmatpush1.xpose.msra.mxu0 0.0
    %131 = vmatprep.subr.mxu0 0.0
    %132 = vmatpush1.xpose.msra.mxu0 0.0
    %133 = vmatprep.subr.mxu0 0.0
    %134 = vmatpush1.xpose.msra.mxu0 0.0
    %135 = vmatprep.subr.mxu0 0.0
    %136 = vmatpush1.xpose.msra.mxu0 0.0
    %137 = vmatprep.subr.mxu0 0.0
    %138 = vmatpush1.xpose.msra.mxu0 0.0
    %139 = vmatprep.subr.mxu0 0.0
    %140 = vmatpush1.xpose.msra.mxu0 0.0
    %141 = vmatprep.subr.mxu0 0.0
    %142 = vmatpush1.xpose.msra.mxu0 0.0
    %143 = vmatprep.mubr.f32.mxu0 0.0
    %144 = vmatmul.mubr.f32.gmra.mrb[0].mxu0 %v62
    %v145 = vpop.f32.mrb[0].mxu0
    %v146 = vadd.f32 %v58, %v145
    %v147 = vpop.f32.mrb[0].mxu0
    %148 = vmatprep.mubr.f32.mxu0 0.0
    %149 = vmatmul.mubr.f32.gmra.mrb[0].mxu0 %v65
    %v150 = vpop.f32.mrb[0].mxu0
    %v151 = vadd.f32 %v58, %v150
    %v152 = vpop.f32.mrb[0].mxu0
    %153 = vdwg.mxu0
    %154 = vst.msk [vmem:[#allocation7] sm:$0xff] %vm60, %v146
    %155 = vst.msk [vmem:[#allocation7 + $0x8] sm:$0xff] %vm60, %v151
    %s156 = scalar_lea.vmem [#allocation5], 32
    %v157 = vld [vmem:[%s156] sm:$0xff]
    %v158 = vld [vmem:[%s156 + $0x8] sm:$0xff]
    %v159 = vld [vmem:[%s156 + $0x10] sm:$0xff]
    %v160 = vld [vmem:[%s156 + $0x18] sm:$0xff]
    %s161 = scalar_lea.vmem %s2, 1
    %v162 = vld [vmem:[%s161] sm:$0x1]
    %v164 = vlaneseq
    %v165 = vshrl.u32 %v164, 7
    %v166 = vsub.s32 0, %v165
    %v167 = vrot.slane %v162, %v166
    %v170 = vsel %vm60, %v157, 0
    %v173 = vsel %vm60, %v158, 0
    %v176 = vsel %vm60, %v159, 0
    %v179 = vsel %vm60, %v160, 0
    %181 = vmatprep.subr.mxu0 0.0
    %182 = vmatpush1.xpose.msra.mxu0 %v170
    %183 = vmatprep.subr.mxu0 0.0
    %184 = vmatpush1.xpose.msra.mxu0 %v173
    %185 = vmatprep.subr.mxu0 0.0
    %186 = vmatpush1.xpose.msra.mxu0 %v176
    %187 = vmatprep.subr.mxu0 0.0
    %188 = vmatpush1.xpose.msra.mxu0 %v179
    %189 = vmatprep.subr.mxu0 0.0
    %190 = vmatpush1.xpose.msra.mxu0 0.0
    %191 = vmatprep.subr.mxu0 0.0
    %192 = vmatpush1.xpose.msra.mxu0 0.0
    %193 = vmatprep.subr.mxu0 0.0
    %194 = vmatpush1.xpose.msra.mxu0 0.0
    %195 = vmatprep.subr.mxu0 0.0
    %196 = vmatpush1.xpose.msra.mxu0 0.0
    %197 = vmatprep.subr.mxu0 0.0
    %198 = vmatpush1.xpose.msra.mxu0 0.0
    %199 = vmatprep.subr.mxu0 0.0
    %200 = vmatpush1.xpose.msra.mxu0 0.0
    %201 = vmatprep.subr.mxu0 0.0
    %202 = vmatpush1.xpose.msra.mxu0 0.0
    %203 = vmatprep.subr.mxu0 0.0
    %204 = vmatpush1.xpose.msra.mxu0 0.0
    %205 = vmatprep.subr.mxu0 0.0
    %206 = vmatpush1.xpose.msra.mxu0 0.0
    %207 = vmatprep.subr.mxu0 0.0
    %208 = vmatpush1.xpose.msra.mxu0 0.0
    %209 = vmatprep.subr.mxu0 0.0
    %210 = vmatpush1.xpose.msra.mxu0 0.0
    %211 = vmatprep.subr.mxu0 0.0
    %212 = vmatpush1.xpose.msra.mxu0 0.0
    %213 = vmatprep.subr.mxu0 0.0
    %214 = vmatpush1.xpose.msra.mxu0 0.0
    %215 = vmatprep.subr.mxu0 0.0
    %216 = vmatpush1.xpose.msra.mxu0 0.0
    %217 = vmatprep.subr.mxu0 0.0
    %218 = vmatpush1.xpose.msra.mxu0 0.0
    %219 = vmatprep.subr.mxu0 0.0
    %220 = vmatpush1.xpose.msra.mxu0 0.0
    %221 = vmatprep.subr.mxu0 0.0
    %222 = vmatpush1.xpose.msra.mxu0 0.0
    %223 = vmatprep.subr.mxu0 0.0
    %224 = vmatpush1.xpose.msra.mxu0 0.0
    %225 = vmatprep.subr.mxu0 0.0
    %226 = vmatpush1.xpose.msra.mxu0 0.0
    %227 = vmatprep.subr.mxu0 0.0
    %228 = vmatpush1.xpose.msra.mxu0 0.0
    %229 = vmatprep.subr.mxu0 0.0
    %230 = vmatpush1.xpose.msra.mxu0 0.0
    %231 = vmatprep.subr.mxu0 0.0
    %232 = vmatpush1.xpose.msra.mxu0 0.0
    %233 = vmatprep.subr.mxu0 0.0
    %234 = vmatpush1.xpose.msra.mxu0 0.0
    %235 = vmatprep.subr.mxu0 0.0
    %236 = vmatpush1.xpose.msra.mxu0 0.0
    %237 = vmatprep.subr.mxu0 0.0
    %238 = vmatpush1.xpose.msra.mxu0 0.0
    %239 = vmatprep.subr.mxu0 0.0
    %240 = vmatpush1.xpose.msra.mxu0 0.0
    %241 = vmatprep.subr.mxu0 0.0
    %242 = vmatpush1.xpose.msra.mxu0 0.0
    %243 = vmatprep.subr.mxu0 0.0
    %244 = vmatpush1.xpose.msra.mxu0 0.0
    %245 = vmatprep.mubr.f32.mxu0 0.0
    %246 = vmatmul.mubr.f32.gmra.mrb[0].mxu0 %v62
    %v247 = vpop.f32.mrb[0].mxu0
    %v248 = vadd.f32 %v167, %v247
    %v249 = vpop.f32.mrb[0].mxu0
    %250 = vmatprep.mubr.f32.mxu0 0.0
    %251 = vmatmul.mubr.f32.gmra.mrb[0].mxu0 %v65
    %v252 = vpop.f32.mrb[0].mxu0
    %v253 = vadd.f32 %v167, %v252
    %v254 = vpop.f32.mrb[0].mxu0
    %255 = vdwg.mxu0
    %256 = vst.msk [vmem:[#allocation8] sm:$0xff] %vm60, %v248
    %257 = vst.msk [vmem:[#allocation8 + $0x8] sm:$0xff] %vm60, %v253
    %s258 = scalar_lea.vmem [#allocation5], 64
    %v259 = vld [vmem:[%s258] sm:$0xff]
    %v260 = vld [vmem:[%s258 + $0x8] sm:$0xff]
    %v261 = vld [vmem:[%s258 + $0x10] sm:$0xff]
    %v262 = vld [vmem:[%s258 + $0x18] sm:$0xff]
    %s263 = scalar_lea.vmem %s2, 2
    %v264 = vld [vmem:[%s263] sm:$0x1]
    %v266 = vlaneseq
    %v267 = vshrl.u32 %v266, 7
    %v268 = vsub.s32 0, %v267
    %v269 = vrot.slane %v264, %v268
    %v272 = vsel %vm60, %v259, 0
    %v275 = vsel %vm60, %v260, 0
    %v278 = vsel %vm60, %v261, 0
    %v281 = vsel %vm60, %v262, 0
    %283 = vmatprep.subr.mxu0 0.0
    %284 = vmatpush1.xpose.msra.mxu0 %v272
    %285 = vmatprep.subr.mxu0 0.0
    %286 = vmatpush1.xpose.msra.mxu0 %v275
    %287 = vmatprep.subr.mxu0 0.0
    %288 = vmatpush1.xpose.msra.mxu0 %v278
    %289 = vmatprep.subr.mxu0 0.0
    %290 = vmatpush1.xpose.msra.mxu0 %v281
    %291 = vmatprep.subr.mxu0 0.0
    %292 = vmatpush1.xpose.msra.mxu0 0.0
    %293 = vmatprep.subr.mxu0 0.0
    %294 = vmatpush1.xpose.msra.mxu0 0.0
    %295 = vmatprep.subr.mxu0 0.0
    %296 = vmatpush1.xpose.msra.mxu0 0.0
    %297 = vmatprep.subr.mxu0 0.0
    %298 = vmatpush1.xpose.msra.mxu0 0.0
    %299 = vmatprep.subr.mxu0 0.0
    %300 = vmatpush1.xpose.msra.mxu0 0.0
    %301 = vmatprep.subr.mxu0 0.0
    %302 = vmatpush1.xpose.msra.mxu0 0.0
    %303 = vmatprep.subr.mxu0 0.0
    %304 = vmatpush1.xpose.msra.mxu0 0.0
    %305 = vmatprep.subr.mxu0 0.0
    %306 = vmatpush1.xpose.msra.mxu0 0.0
    %307 = vmatprep.subr.mxu0 0.0
    %308 = vmatpush1.xpose.msra.mxu0 0.0
    %309 = vmatprep.subr.mxu0 0.0
    %310 = vmatpush1.xpose.msra.mxu0 0.0
    %311 = vmatprep.subr.mxu0 0.0
    %312 = vmatpush1.xpose.msra.mxu0 0.0
    %313 = vmatprep.subr.mxu0 0.0
    %314 = vmatpush1.xpose.msra.mxu0 0.0
    %315 = vmatprep.subr.mxu0 0.0
    %316 = vmatpush1.xpose.msra.mxu0 0.0
    %317 = vmatprep.subr.mxu0 0.0
    %318 = vmatpush1.xpose.msra.mxu0 0.0
    %319 = vmatprep.subr.mxu0 0.0
    %320 = vmatpush1.xpose.msra.mxu0 0.0
    %321 = vmatprep.subr.mxu0 0.0
    %322 = vmatpush1.xpose.msra.mxu0 0.0
    %323 = vmatprep.subr.mxu0 0.0
    %324 = vmatpush1.xpose.msra.mxu0 0.0
    %325 = vmatprep.subr.mxu0 0.0
    %326 = vmatpush1.xpose.msra.mxu0 0.0
    %327 = vmatprep.subr.mxu0 0.0
    %328 = vmatpush1.xpose.msra.mxu0 0.0
    %329 = vmatprep.subr.mxu0 0.0
    %330 = vmatpush1.xpose.msra.mxu0 0.0
    %331 = vmatprep.subr.mxu0 0.0
    %332 = vmatpush1.xpose.msra.mxu0 0.0
    %333 = vmatprep.subr.mxu0 0.0
    %334 = vmatpush1.xpose.msra.mxu0 0.0
    %335 = vmatprep.subr.mxu0 0.0
    %336 = vmatpush1.xpose.msra.mxu0 0.0
    %337 = vmatprep.subr.mxu0 0.0
    %338 = vmatpush1.xpose.msra.mxu0 0.0
    %339 = vmatprep.subr.mxu0 0.0
    %340 = vmatpush1.xpose.msra.mxu0 0.0
    %341 = vmatprep.subr.mxu0 0.0
    %342 = vmatpush1.xpose.msra.mxu0 0.0
    %343 = vmatprep.subr.mxu0 0.0
    %344 = vmatpush1.xpose.msra.mxu0 0.0
    %345 = vmatprep.subr.mxu0 0.0
    %346 = vmatpush1.xpose.msra.mxu0 0.0
    %347 = vmatprep.mubr.f32.mxu0 0.0
    %348 = vmatmul.mubr.f32.gmra.mrb[0].mxu0 %v62
    %v349 = vpop.f32.mrb[0].mxu0
    %v350 = vadd.f32 %v269, %v349
    %v351 = vpop.f32.mrb[0].mxu0
    %352 = vmatprep.mubr.f32.mxu0 0.0
    %353 = vmatmul.mubr.f32.gmra.mrb[0].mxu0 %v65
    %v354 = vpop.f32.mrb[0].mxu0
    %v355 = vadd.f32 %v269, %v354
    %v356 = vpop.f32.mrb[0].mxu0
    %357 = vdwg.mxu0
    %358 = vst.msk [vmem:[#allocation10] sm:$0xff] %vm60, %v350
    %359 = vst.msk [vmem:[#allocation10 + $0x8] sm:$0xff] %vm60, %v355
    // Predicated region
    $region22: #{tpu_custom_call.1} parent=1 // pred_check
      _
    $region23: #{tpu_custom_call.1} parent=1 // pred_check_branch
      %361 = sbr.rel (0) target = $region25
    $region24: #{tpu_custom_call.1} parent=1 // pred_region
      %s363 = ssub.s32 256, 256
      %364 = vsyncadd [#allocation4], %s363
      %s365 = sshll.u32 [#allocation7], 4
      %s366 = int_to_ptr.vmem [resolvable:$true] %s365
      %371 = dma.vmem_to_hbm [thread:$0]  %s366, 256, %s3, [#allocation4], 128, 128, 8
    $region25: #{tpu_custom_call.1} parent=1 // pred_fallthru
      _
    // Predicated region
    $region26: #{tpu_custom_call.1} parent=1 // pred_check
      _
    $region27: #{tpu_custom_call.1} parent=1 // pred_check_branch
      %373 = sbr.rel (0) target = $region29
    $region28: #{tpu_custom_call.1} parent=1 // pred_region
      %s375 = ssub.s32 256, 256
      %376 = vsyncadd [#allocation9], %s375
      %s377 = sshll.u32 [#allocation8], 4
      %s378 = int_to_ptr.vmem [resolvable:$true] %s377
      %383 = dma.vmem_to_hbm [thread:$0]  %s378, 256, %s4, [#allocation9], 128, 128, 8
    $region29: #{tpu_custom_call.1} parent=1 // pred_fallthru
      _
    // Predicated region
    $region30: #{tpu_custom_call.1} parent=1 // pred_check
      _
    $region31: #{tpu_custom_call.1} parent=1 // pred_check_branch
      %385 = sbr.rel (0) target = $region33
    $region32: #{tpu_custom_call.1} parent=1 // pred_region
      %s387 = ssub.s32 256, 256
      %388 = vsyncadd [#allocation9], %s387
      %s389 = sshll.u32 [#allocation10], 4
      %s390 = int_to_ptr.vmem [resolvable:$true] %s389
      %395 = dma.vmem_to_hbm [thread:$0]  %s390, 256, %s5, [#allocation9], 128, 128, 8
    $region33: #{tpu_custom_call.1} parent=1 // pred_fallthru
      _
    // Predicated region
    $region34: #{tpu_custom_call.1} parent=1 // pred_check
      _
    $region35: #{tpu_custom_call.1} parent=1 // pred_check_branch
      %397 = sbr.rel (0) target = $region37
    $region36: #{tpu_custom_call.1} parent=1 // pred_region
      %398 = dma.done [#allocation4], 256
    $region37: #{tpu_custom_call.1} parent=1 // pred_fallthru
      _
    // Predicated region
    $region38: #{tpu_custom_call.1} parent=1 // pred_check
      _
    $region39: #{tpu_custom_call.1} parent=1 // pred_check_branch
      %400 = sbr.rel (0) target = $region41
    $region40: #{tpu_custom_call.1} parent=1 // pred_region
      %401 = dma.done [#allocation9], 256
    $region41: #{tpu_custom_call.1} parent=1 // pred_fallthru
      _
    // Predicated region
    $region42: #{tpu_custom_call.1} parent=1 // pred_check
      _
    $region43: #{tpu_custom_call.1} parent=1 // pred_check_branch
      %403 = sbr.rel (0) target = $region45
    $region44: #{tpu_custom_call.1} parent=1 // pred_region
      %404 = dma.done [#allocation9], 256
    $region45: #{tpu_custom_call.1} parent=1 // pred_fallthru
      _
    %405 = vsyncpa [#allocation3], 1
    %406 = vsyncpa [#allocation6], 1
    %407 = vsyncpa [#allocation4], 1
    %408 = vsyncpa [#allocation9], 1

</llo_original>
